<compile_context>
chip_gen: v7x
topology: tpu7x:2x2x1
jax: 0.10.0
libtpu: 0.0.40
codegen_flags: <defaults>
</compile_context>

<pallas_src>
import functools
import math

import jax
import jax.numpy as jnp
from jax.experimental import pallas as pl
from jax.experimental.pallas import tpu as pltpu

_LANE = 128
_SUBLANE = 8
_MAX_COLS = 4096
_TARGET_BLOCK_BYTES = 2 << 20   # 2 MiB per block: 6 live blocks = 12 MiB VMEM


# ----------------------------- kernel bodies ------------------------------ #

def _add_kernel(a_ref, b_ref, o_ref):
    o_ref[...] = a_ref[...] + b_ref[...]


def _cat_select_kernel(a_ref, b_ref, o_ref, *, nb1):
    """Copy the main block for grid steps j < nb1, else the aux block."""
    j = pl.program_id(1)

    @pl.when(j < nb1)
    def _():
        o_ref[...] = a_ref[...]

    @pl.when(j >= nb1)
    def _():
        o_ref[...] = b_ref[...]


# ----------------------------- layout helpers ----------------------------- #

def _divisors(n):
    out = set()
    d = 1
    while d * d <= n:
        if n % d == 0:
            out.add(d)
            out.add(n // d)
        d += 1
    return sorted(out)


def _lane_dense_2d(total):
    """(rows, cols): cols a multiple of 128 dividing `total`, rows kept >= 8
    when possible so blocks are sublane-dense.  None if total % 128 != 0."""
    if total % _LANE:
        return None
    cols = _LANE
    while (cols * 2 <= _MAX_COLS and total % (cols * 2) == 0
           and total // (cols * 2) >= _SUBLANE):
        cols *= 2
    return total // cols, cols


def _row_tile(rows, cols, itemsize):
    """Row tile: full rows if small, else a multiple of 8 targeting ~2 MiB."""
    if rows <= _SUBLANE:
        return rows
    cap = max(_SUBLANE,
              (_TARGET_BLOCK_BYTES // (cols * itemsize)) // _SUBLANE * _SUBLANE)
    return min(rows, cap)


def _choose_cat_tiling(l1, l2, itemsize):
    """Pick (cols, rt) with cols % 128 == 0, cols | l1, cols | l2,
    rt % 8 == 0, rt | (l1 // cols), block bytes <= ~2 MiB.  None if no
    sublane-dense option exists (then the NCHW fallback is used)."""
    if l1 % _LANE or l2 % _LANE:
        return None
    m = math.gcd(l1, l2) // _LANE
    best = None                        # (block_bytes, cols, rt)
    for d in _divisors(m):
        cols = d * _LANE
        if cols > _MAX_COLS:
            continue
        rows1 = l1 // cols
        cap = max(1, _TARGET_BLOCK_BYTES // (cols * itemsize))
        rt = 0
        for r in _divisors(rows1):
            if r <= cap and r % _SUBLANE == 0:
                rt = max(rt, r)
        if rt == 0:
            continue
        key = rt * cols * itemsize
        if best is None or key > best[0]:
            best = (key, cols, rt)
    if best is None:
        return None
    return best[1], best[2]


# ------------------------------- 'add' path -------------------------------- #

def _add_2d(a2, b2, cost):
    rows, cols = a2.shape
    tr = _row_tile(rows, cols, a2.dtype.itemsize)
    spec = pl.BlockSpec((tr, cols), lambda i: (i, 0))
    return pl.pallas_call(
        _add_kernel,
        out_shape=jax.ShapeDtypeStruct((rows, cols), a2.dtype),
        grid=(pl.cdiv(rows, tr),),
        in_specs=[spec, spec],
        out_specs=spec,
        compiler_params=pltpu.CompilerParams(
            dimension_semantics=("parallel",)),
        cost_estimate=cost,
    )(a2, b2)


def _skip_add(x_main, x_aux):
    orig_shape = x_main.shape
    total = math.prod(orig_shape)
    itemsize = x_main.dtype.itemsize
    cost = pl.CostEstimate(flops=total, transcendentals=0,
                           bytes_accessed=3 * total * itemsize)
    shape2d = _lane_dense_2d(total)
    if shape2d is None:
        # TODO(synk): element count not a multiple of 128 -> tiled 2D view over
        # the leading dims; stores may be lane-masked if the trailing dim is
        # not a multiple of 128, but VMEM stays bounded and pipelined.
        last = orig_shape[-1] if x_main.ndim > 1 else total
        shape2d = (total // last, last)
    a2 = x_main.reshape(shape2d)
    b2 = x_aux.reshape(shape2d)
    return _add_2d(a2, b2, cost).reshape(orig_shape)


# ------------------------------- 'cat' path -------------------------------- #

def _cat_aligned(x_main, x_aux, out_shape_nchw):
    n = x_main.shape[0]
    itemsize = x_main.dtype.itemsize
    l1 = math.prod(x_main.shape[1:])
    l2 = math.prod(x_aux.shape[1:])
    cols, rt = _choose_cat_tiling(l1, l2, itemsize)
    rows1, rows2 = l1 // cols, l2 // cols
    rows_out = rows1 + rows2
    nb1 = rows1 // rt                     # exact: rt | rows1
    nb2 = pl.cdiv(rows2, rt)              # aux last block may be partial
    a3 = x_main.reshape(n, rows1, cols)
    b3 = x_aux.reshape(n, rows2, cols)
    out_bytes = n * rows_out * cols * itemsize

    out3 = pl.pallas_call(
        functools.partial(_cat_select_kernel, nb1=nb1),
        out_shape=jax.ShapeDtypeStruct((n, rows_out, cols), x_main.dtype),
        grid=(n, nb1 + nb2),
        in_specs=[
            # Unused-phase index clamps to the previously fetched block, so
            # the pipeline skips the redundant DMA (traffic stays minimal).
            pl.BlockSpec((1, rt, cols),
                         lambda b, j, nb1=nb1: (b, jnp.minimum(j, nb1 - 1), 0)),
            pl.BlockSpec((1, rt, cols),
                         lambda b, j, nb1=nb1: (b, jnp.maximum(j - nb1, 0), 0)),
        ],
        out_specs=pl.BlockSpec((1, rt, cols), lambda b, j: (b, j, 0)),
        compiler_params=pltpu.CompilerParams(
            dimension_semantics=("parallel", "parallel")),
        cost_estimate=pl.CostEstimate(flops=0, transcendentals=0,
                                      bytes_accessed=2 * out_bytes),
    )(a3, b3)
    return out3.reshape(out_shape_nchw)


def _cat_channels(x_main, x_aux, out_shape_nchw):
    """Fallback: tiled per-(sample, channel) copy.  Blocks use the full (H, W)
    trailing dims (always layout-legal); VMEM stays bounded."""
    n, c1, h, w = x_main.shape
    c2 = x_aux.shape[1]
    itemsize = x_main.dtype.itemsize
    out_bytes = math.prod(out_shape_nchw) * itemsize
    # TODO(synk): lane-masked stores when W < 128; only used when the
    # per-sample row (C*H*W) is not expressible as sublane/lane-dense tiles.
    return pl.pallas_call(
        functools.partial(_cat_select_kernel, nb1=c1),
        out_shape=jax.ShapeDtypeStruct(out_shape_nchw, x_main.dtype),
        grid=(n, c1 + c2),
        in_specs=[
            pl.BlockSpec((1, 1, h, w),
                         lambda b, j, c1=c1: (b, jnp.minimum(j, c1 - 1), 0, 0)),
            pl.BlockSpec((1, 1, h, w),
                         lambda b, j, c1=c1: (b, jnp.maximum(j - c1, 0), 0, 0)),
        ],
        out_specs=pl.BlockSpec((1, 1, h, w), lambda b, j: (b, j, 0, 0)),
        compiler_params=pltpu.CompilerParams(
            dimension_semantics=("parallel", "parallel")),
        cost_estimate=pl.CostEstimate(flops=0, transcendentals=0,
                                      bytes_accessed=2 * out_bytes),
    )(x_main, x_aux)


# -------------------------------- wrapper ---------------------------------- #

def skip_connect(x_main, x_aux, connect: str):
    """Pallas equivalent of Skip_connect.forward (NCHW, like PyTorch).

    connect == 'add': x_main + x_aux      (same shape)
    connect == 'cat': concat along dim=1  (channel dim)
    """
    if connect == 'add':
        assert x_main.shape == x_aux.shape
        assert x_main.dtype == x_aux.dtype
        return _skip_add(x_main, x_aux)

    elif connect == 'cat':
        assert x_main.ndim == 4 and x_aux.ndim == 4
        n, c1, h, w = x_main.shape
        n2, c2, h2, w2 = x_aux.shape
        assert (n, h, w) == (n2, h2, w2)
        assert x_main.dtype == x_aux.dtype
        out_shape = (n, c1 + c2, h, w)
        l1, l2 = c1 * h * w, c2 * h * w
        if _choose_cat_tiling(l1, l2, x_main.dtype.itemsize) is not None:
            return _cat_aligned(x_main, x_aux, out_shape)
        return _cat_channels(x_main, x_aux, out_shape)

    else:
        raise ValueError(f"unknown connect mode: {connect}")


# --------------------------------- demo ------------------------------------ #

if __name__ == "__main__":
    key = jax.random.PRNGKey(0)
    k1, k2, k3, k4, k5, k6 = jax.random.split(key, 6)

    # Small NCHW shapes matching the module (batch=2, channels=4, spatial=16).
    xm = jax.random.normal(k1, (2, 4, 16, 16), dtype=jnp.float32)
    xa = jax.random.normal(k2, (2, 4, 16, 16), dtype=jnp.float32)

    out_add = jax.block_until_ready(skip_connect(xm, xa, 'add'))
    assert out_add.shape == (2, 4, 16, 16)
    assert jnp.allclose(out_add, xm + xa, atol=1e-6)

    out_cat = jax.block_until_ready(skip_connect(xm, xa, 'cat'))
    assert out_cat.shape == (2, 8, 16, 16)
    assert jnp.allclose(out_cat, jnp.concatenate((xm, xa), axis=1), atol=1e-6)

    # Moderately larger inputs: multi-block add grid and asymmetric-channel
    # cat with a partial last aux block.
    ym = jax.random.normal(k3, (2, 64, 64, 128), dtype=jnp.float32)
    ya = jax.random.normal(k4, (2, 64, 64, 128), dtype=jnp.float32)
    big_add = jax.block_until_ready(skip_connect(ym, ya, 'add'))
    assert big_add.shape == (2, 64, 64, 128)
    assert jnp.allclose(big_add, ym + ya, atol=1e-6)

    zm = jax.random.normal(k5, (2, 24, 64, 128), dtype=jnp.float32)
    za = jax.random.normal(k6, (2, 40, 64, 128), dtype=jnp.float32)
    big_cat = jax.block_until_ready(skip_connect(zm, za, 'cat'))
    assert big_cat.shape == (2, 64, 64, 128)
    assert jnp.allclose(big_cat, jnp.concatenate((zm, za), axis=1), atol=1e-6)

    # Misaligned shapes exercise the tiled fallback paths.
    wm = jax.random.normal(k1, (2, 3, 5, 7), dtype=jnp.float32)
    wa = jax.random.normal(k2, (2, 3, 5, 7), dtype=jnp.float32)
    odd_add = jax.block_until_ready(skip_connect(wm, wa, 'add'))
    assert jnp.allclose(odd_add, wm + wa, atol=1e-6)
    odd_cat = jax.block_until_ready(skip_connect(wm, wa, 'cat'))
    assert odd_cat.shape == (2, 6, 5, 7)
    assert jnp.allclose(odd_cat, jnp.concatenate((wm, wa), axis=1), atol=1e-6)

    print("KERNEL_OK")
</pallas_src>

<mosaic_0001>
module attributes {stable_mosaic.version = 11 : i64} {
  func.func @_add_kernel(%arg0: i32, %arg1: memref<8x256xf32, #tpu.memory_space<vmem>>, %arg2: memref<8x256xf32, #tpu.memory_space<vmem>>, %arg3: memref<8x256xf32, #tpu.memory_space<vmem>>) attributes {dimension_semantics = [#tpu.dimension_semantics<parallel>], iteration_bounds = array<i64: 1>, scalar_prefetch = 0 : i64, scratch_operands = 0 : i64, tpu.core_type = #tpu.core_type<tc>, window_params = [{transform_indices = @transform_0, window_bounds = array<i64: 8, 256>}, {transform_indices = @transform_1, window_bounds = array<i64: 8, 256>}, {transform_indices = @transform_2, window_bounds = array<i64: 8, 256>}]} {
    %c0 = arith.constant 0 : index
    %c0_0 = arith.constant 0 : index
    %0 = vector.load %arg1[%c0, %c0_0] : memref<8x256xf32, #tpu.memory_space<vmem>>, vector<8x256xf32>
    %c0_1 = arith.constant 0 : index
    %c0_2 = arith.constant 0 : index
    %1 = vector.load %arg2[%c0_1, %c0_2] : memref<8x256xf32, #tpu.memory_space<vmem>>, vector<8x256xf32>
    %2 = arith.addf %0, %1 : vector<8x256xf32>
    %c0_3 = arith.constant 0 : index
    %c0_4 = arith.constant 0 : index
    %3 = vector.load %arg3[%c0_3, %c0_4] : memref<8x256xf32, #tpu.memory_space<vmem>>, vector<8x256xf32>
    tpu.vector_store %arg3[%c0_3, %c0_4], %2 {strides = array<i32>} : memref<8x256xf32, #tpu.memory_space<vmem>>, vector<8x256xf32>,
    return
  }
  func.func @transform_0(%arg0: i32) -> (i32, i32) {
    %c0_i32 = arith.constant 0 : i32
    %c0_i32_0 = arith.constant 0 : i32
    return %arg0, %c0_i32 : i32, i32
  }
  func.func @transform_1(%arg0: i32) -> (i32, i32) {
    %c0_i32 = arith.constant 0 : i32
    %c0_i32_0 = arith.constant 0 : i32
    return %arg0, %c0_i32 : i32, i32
  }
  func.func @transform_2(%arg0: i32) -> (i32, i32) {
    %c0_i32 = arith.constant 0 : i32
    %c0_i32_0 = arith.constant 0 : i32
    return %arg0, %c0_i32 : i32, i32
  }
}

</mosaic_0001>

<llo_original>
// kernel: tpu_custom_call.1
$region0: #{tpu_custom_call.1}
  #allocation0 [shape = 'u32[]', space=smem, size = 0x4, offset = 0x4, fixed_abs, tag = 'smem constant byte address 0x4 - core index']
  #allocation1 [shape = 'u32[144,128]{1,0:T(1,128)}', space=vmem, size = 0x12000, scoped, tag = 'internal scratch']
  %s0 = inlined_call_operand.hbm [shape: f32[8,256], index: 0, kind: input, shape index: {}]
  %s1 = inlined_call_operand.hbm [shape: f32[8,256], index: 1, kind: input, shape index: {}]
  %s2 = inlined_call_operand.hbm [shape: f32[8,256], index: 2, kind: output, shape index: {}]
  %s3 = sld [smem:[#allocation0]]
  $region26: #{tpu_custom_call.1} parent=0
    _
  %s5 = ssub.s32 1, %s3
  %s6 = scalar_select 0, %s5, %s3
  $region1: #{tpu_custom_call.1} parent=0
    #allocation2 [shape = 'u8[8192]{0}', space=vmem, size = 0x2000, scoped, tag = 'input window, operand 0, single buffered']
    #allocation3 [shape = 's32[1]{0}', space=sflag, size = 0x4, scoped, tag = 'scoped memory for tpu_custom_call.1']
    #allocation4 [shape = 's32[1]{0}', space=sflag, size = 0x4, scoped, tag = 'scoped memory for tpu_custom_call.1']
    #allocation5 [shape = 'u8[8192]{0}', space=vmem, size = 0x2000, scoped, tag = 'input window, operand 1, single buffered']
    #allocation6 [shape = 's32[1]{0}', space=sflag, size = 0x4, scoped, tag = 'scoped memory for tpu_custom_call.1']
    #allocation7 [shape = 'u8[8192]{0}', space=vmem, size = 0x2000, scoped, tag = 'output window, operand 0, single buffered']
    %7 = vsyncpa [#allocation3], 0
    %8 = vsyncpa [#allocation6], 0
    %9 = vsyncpa [#allocation4], 0
    // Predicated region
    $region2: #{tpu_custom_call.1} parent=1 // pred_check
      _
    $region3: #{tpu_custom_call.1} parent=1 // pred_check_branch
      %11 = sbr.rel (0) target = $region5
    $region4: #{tpu_custom_call.1} parent=1 // pred_region
      %s13 = ssub.s32 256, 256
      %14 = vsyncadd [#allocation3], %s13
      %s16 = sshll.u32 [#allocation2], 4
      %s17 = int_to_ptr.vmem [resolvable:$true] %s16
      %19 = dma.hbm_to_vmem [thread:$0]  %s0, 256, %s17, [#allocation3]
    $region5: #{tpu_custom_call.1} parent=1 // pred_fallthru
      _
    // Predicated region
    $region6: #{tpu_custom_call.1} parent=1 // pred_check
      _
    $region7: #{tpu_custom_call.1} parent=1 // pred_check_branch
      %21 = sbr.rel (0) target = $region9
    $region8: #{tpu_custom_call.1} parent=1 // pred_region
      %s23 = ssub.s32 256, 256
      %24 = vsyncadd [#allocation6], %s23
      %s26 = sshll.u32 [#allocation5], 4
      %s27 = int_to_ptr.vmem [resolvable:$true] %s26
      %29 = dma.hbm_to_vmem [thread:$0]  %s1, 256, %s27, [#allocation6]
    $region9: #{tpu_custom_call.1} parent=1 // pred_fallthru
      _
    // Predicated region
    $region10: #{tpu_custom_call.1} parent=1 // pred_check
      _
    $region11: #{tpu_custom_call.1} parent=1 // pred_check_branch
      %31 = sbr.rel (0) target = $region13
    $region12: #{tpu_custom_call.1} parent=1 // pred_region
      %32 = dma.done [#allocation3], 256
    $region13: #{tpu_custom_call.1} parent=1 // pred_fallthru
      _
    // Predicated region
    $region14: #{tpu_custom_call.1} parent=1 // pred_check
      _
    $region15: #{tpu_custom_call.1} parent=1 // pred_check_branch
      %34 = sbr.rel (0) target = $region17
    $region16: #{tpu_custom_call.1} parent=1 // pred_region
      %35 = dma.done [#allocation6], 256
    $region17: #{tpu_custom_call.1} parent=1 // pred_fallthru
      _
    %v36 = vld [vmem:[#allocation2] sm:$0xff]
    %v37 = vld [vmem:[#allocation2 + $0x8] sm:$0xff]
    %v38 = vld [vmem:[#allocation5] sm:$0xff]
    %v39 = vld [vmem:[#allocation5 + $0x8] sm:$0xff]
    %v40 = vadd.f32 %v36, %v38
    %v41 = vadd.f32 %v37, %v39
    %42 = vst [vmem:[#allocation7] sm:$0xff] %v40
    %43 = vst [vmem:[#allocation7 + $0x8] sm:$0xff] %v41
    // Predicated region
    $region18: #{tpu_custom_call.1} parent=1 // pred_check
      _
    $region19: #{tpu_custom_call.1} parent=1 // pred_check_branch
      %45 = sbr.rel (0) target = $region21
    $region20: #{tpu_custom_call.1} parent=1 // pred_region
      %s47 = ssub.s32 256, 256
      %48 = vsyncadd [#allocation4], %s47
      %s50 = sshll.u32 [#allocation7], 4
      %s51 = int_to_ptr.vmem [resolvable:$true] %s50
      %53 = dma.vmem_to_hbm [thread:$0]  %s51, 256, %s2, [#allocation4]
    $region21: #{tpu_custom_call.1} parent=1 // pred_fallthru
      _
    // Predicated region
    $region22: #{tpu_custom_call.1} parent=1 // pred_check
      _
    $region23: #{tpu_custom_call.1} parent=1 // pred_check_branch
      %55 = sbr.rel (0) target = $region25
    $region24: #{tpu_custom_call.1} parent=1 // pred_region
      %56 = dma.done [#allocation4], 256
    $region25: #{tpu_custom_call.1} parent=1 // pred_fallthru
      _
    %57 = vsyncpa [#allocation3], 1
    %58 = vsyncpa [#allocation6], 1
    %59 = vsyncpa [#allocation4], 1

</llo_original>
